<compile_context>
chip_gen: v7x
topology: tpu7x:2x2x1
jax: 0.10.0
libtpu: 0.0.40
codegen_flags: <defaults>
</compile_context>

<pallas_src>
import numpy as np
import jax
import jax.numpy as jnp
from jax.experimental import pallas as pl
from jax.experimental.pallas import tpu as pltpu

HIDDEN = 128  # padded from 64 -> 128 (lane-dense, full MXU contraction tile)


# ----------------------------------------------------------------------------
# Fused Pallas kernel: the entire DDIM sampling loop, one grid step per
# diffusion step.
#   et      = MLP(xt) with per-step bias (b1 + temb)      (MXU matmuls)
#   xt_next = a*xt + b*et + c1*noise                      (VPU, 2 FMA + 1 mul)
# where (a, b, c1) fold the full generalized DDIM step:
#   a  = sqrt(at_next)/sqrt(at)
#   b  = c2 - sqrt(at_next)*sqrt(1-at)/sqrt(at)
# ----------------------------------------------------------------------------
def _ddim_loop_kernel(scal_ref,      # SMEM (S, 8) per-step scalars
                      x0_ref,        # VMEM (Bn, D) initial x_T (resident)
                      noise_ref,     # VMEM (Bn, D) this step's noise
                      bias1_ref,     # VMEM (1, H)  this step's b1 + time-emb
                      w1_ref,        # VMEM (D, H)  resident
                      w2_ref,        # VMEM (H, D)  resident
                      b2_ref,        # VMEM (1, D)  resident
                      out_ref):      # VMEM (Bn, D) xt accumulator / output
    step = pl.program_id(0)

    @pl.when(step == 0)
    def _():
        out_ref[...] = x0_ref[...]

    xt = out_ref[...]                                              # (Bn, D)

    # surrogate epsilon_theta: 2-layer MLP, time embedding folded into bias1
    h = jnp.tanh(
        jnp.dot(xt, w1_ref[...], preferred_element_type=jnp.float32)
        + bias1_ref[...])                                          # (Bn, H)
    et = jnp.dot(h, w2_ref[...],
                 preferred_element_type=jnp.float32) + b2_ref[...]  # (Bn, D)

    a  = scal_ref[step, 0]
    b  = scal_ref[step, 1]
    c1 = scal_ref[step, 2]

    out_ref[...] = a * xt + b * et + c1 * noise_ref[...]


def ddim_sample_fused(scal_tab, x0, noise_all, bias1_tab, w1, w2, b2):
    num_steps, Bn, D = noise_all.shape
    H = w1.shape[1]
    return pl.pallas_call(
        _ddim_loop_kernel,
        out_shape=jax.ShapeDtypeStruct((Bn, D), jnp.float32),
        grid=(num_steps,),
        in_specs=[
            pl.BlockSpec(memory_space=pltpu.MemorySpace.SMEM),       # scal table
            pl.BlockSpec((Bn, D), lambda s: (0, 0)),                 # x0 (resident)
            pl.BlockSpec((None, Bn, D), lambda s: (s, 0, 0)),        # per-step noise
            pl.BlockSpec((None, 1, H), lambda s: (s, 0, 0)),         # per-step bias1
            pl.BlockSpec((D, H), lambda s: (0, 0)),                  # w1 (resident)
            pl.BlockSpec((H, D), lambda s: (0, 0)),                  # w2 (resident)
            pl.BlockSpec((1, D), lambda s: (0, 0)),                  # b2 (resident)
        ],
        out_specs=pl.BlockSpec((Bn, D), lambda s: (0, 0)),           # xt accumulator
        compiler_params=pltpu.CompilerParams(
            dimension_semantics=("arbitrary",)),
    )(scal_tab, x0, noise_all, bias1_tab, w1, w2, b2)


# ----------------------------------------------------------------------------
# DiffSTG wrapper (plain-JAX glue: schedules, noise, reshapes, param setup)
# ----------------------------------------------------------------------------
class DiffSTG:
    def __init__(self, config):
        self.config = config
        self.N = config["N"]
        self.sample_steps = config["sample_steps"]
        self.sample_strategy = config["sample_strategy"]
        self.beta_start = config.get("beta_start", 0.0001)
        self.beta_end = config.get("beta_end", 0.02)
        self.beta_schedule = config["beta_schedule"]
        self.F = config["F"]

        if self.beta_schedule == "uniform":
            self.beta = np.linspace(self.beta_start, self.beta_end, self.N)
        elif self.beta_schedule == "quad":
            self.beta = np.linspace(self.beta_start ** 0.5,
                                    self.beta_end ** 0.5, self.N) ** 2
        else:
            raise NotImplementedError
        self.alpha = 1.0 - self.beta
        self.alpha_bar = np.cumprod(self.alpha)
        # cumprod of (1 - [0, beta...]) -> index with t+1  (compute_alpha)
        self._alpha_bar_pad = np.cumprod(1.0 - np.concatenate([[0.0], self.beta]))

        # deterministic surrogate eps_model parameters (f32; bf16 cast would be
        # the next step on v6e/v7x at realistic UGnet scale)
        D = config["D_flat"]
        kw = jax.random.PRNGKey(0)
        k1, k2 = jax.random.split(kw)
        self.w1 = (0.02 * jax.random.normal(k1, (D, HIDDEN))).astype(jnp.float32)
        self._b1_np = np.zeros((HIDDEN,), np.float32)
        self.w2 = (0.02 * jax.random.normal(k2, (HIDDEN, D))).astype(jnp.float32)
        self.b2 = jnp.zeros((1, D), jnp.float32)

    @staticmethod
    def _time_embedding(t, dim):
        half = dim // 2
        freqs = np.exp(-np.log(10000.0) * np.arange(half) / half)
        ang = float(t) * freqs
        return np.concatenate([np.sin(ang), np.cos(ang)]).astype(np.float32)  # (dim,)

    def _compute_alpha(self, t):
        # scalar version of compute_alpha (t identical across batch)
        return float(self._alpha_bar_pad[t + 1])

    def _build_schedule(self, eta=1.0):
        """Per-step folded DDIM coefficients + (b1 + temb) bias table."""
        N, timesteps = self.N, self.sample_steps
        if self.beta_schedule == "uniform":
            skip = N // timesteps
            seq = list(range(0, N, skip))
        elif self.beta_schedule == "quad":
            seq = [int(s) for s in np.linspace(0, np.sqrt(N * 0.8), timesteps) ** 2]
        else:
            raise NotImplementedError
        seq_next = [-1] + list(seq[:-1])

        rows, biases = [], []
        for i, j in zip(reversed(seq), reversed(seq_next)):
            at = self._compute_alpha(i)
            at_next = self._compute_alpha(j)
            c1 = eta * np.sqrt((1.0 - at / at_next) * (1.0 - at_next) / (1.0 - at))
            c2 = np.sqrt(max(1.0 - at_next - c1 ** 2, 0.0))
            a = np.sqrt(at_next) / np.sqrt(at)
            b = c2 - np.sqrt(at_next) * np.sqrt(1.0 - at) / np.sqrt(at)
            rows.append([a, b, c1, 0.0, 0.0, 0.0, 0.0, 0.0])   # padded to 8
            biases.append(self._b1_np + self._time_embedding(i, HIDDEN))

        scal_tab = jnp.asarray(np.asarray(rows, np.float32))                  # (S, 8)
        bias1_tab = jnp.asarray(np.asarray(biases, np.float32)[:, None, :])   # (S, 1, H)
        return scal_tab, bias1_tab

    def p_sample_loop_ddim(self, x_masked, key):
        # TODO(synk): condition c (x_masked contents) is not consumed by the
        # surrogate epsilon_theta; only the shape is used (UGnet source missing).
        Bn, F, V, T = x_masked.shape
        D = F * V * T
        Bn_pad = ((Bn + 7) // 8) * 8        # full f32 sublanes

        scal_tab, bias1_tab = self._build_schedule(eta=1.0)
        S = scal_tab.shape[0]

        key, k0, k1 = jax.random.split(key, 3)
        x0 = jax.random.normal(k0, (Bn_pad, D), jnp.float32)               # x_T
        noise_all = jax.random.normal(k1, (S, Bn_pad, D), jnp.float32)     # all steps

        xt = ddim_sample_fused(scal_tab, x0, noise_all, bias1_tab,
                               self.w1, self.w2, self.b2)
        return xt[:Bn].reshape(Bn, F, V, T)

    def evaluate(self, inputs, n_samples=2, key=None):
        x_masked, _, _ = inputs
        B, F, V, T = x_masked.shape
        if self.sample_strategy == "ddim_multi":
            x_rep = jnp.repeat(x_masked[:, None], n_samples, axis=1)
            x_rep = x_rep.reshape(-1, F, V, T)
            x_last = self.p_sample_loop_ddim(x_rep, key)
            return x_last.reshape(B, n_samples, F, V, T)
        else:
            raise NotImplementedError

    def forward(self, inputs, n_samples=1, key=None):
        return self.evaluate(inputs, n_samples, key=key)


# ----------------------------------------------------------------------------
if __name__ == "__main__":
    # small shapes: B=2, F=1 (config.F), V=16 nodes, T=8 timesteps -> D=128
    B, F, V, T = 2, 1, 16, 8
    n_samples = 2

    config = {
        "N": 20,
        "sample_steps": 4,
        "sample_strategy": "ddim_multi",
        "beta_schedule": "uniform",
        "beta_start": 0.0001,
        "beta_end": 0.02,
        "F": F,
        "D_flat": F * V * T,
    }

    model = DiffSTG(config)

    key = jax.random.PRNGKey(0)
    key, kx = jax.random.split(key)
    x_masked = jax.random.normal(kx, (B, F, V, T), jnp.float32)
    inputs = (x_masked, None, None)

    out = model.forward(inputs, n_samples=n_samples, key=key)
    out = jax.block_until_ready(out)
    assert out.shape == (B, n_samples, F, V, T)
    assert bool(jnp.all(jnp.isfinite(out)))
    print("KERNEL_OK")
</pallas_src>

<mosaic_0001>
module attributes {stable_mosaic.version = 11 : i64} {
  func.func @_ddim_loop_kernel(%arg0: i32, %arg1: memref<4x8xf32, #tpu.memory_space<smem>>, %arg2: memref<8x128xf32, #tpu.memory_space<vmem>>, %arg3: memref<1x8x128xf32, #tpu.memory_space<vmem>>, %arg4: memref<1x1x128xf32, #tpu.memory_space<vmem>>, %arg5: memref<128x128xf32, #tpu.memory_space<vmem>>, %arg6: memref<128x128xf32, #tpu.memory_space<vmem>>, %arg7: memref<1x128xf32, #tpu.memory_space<vmem>>, %arg8: memref<8x128xf32, #tpu.memory_space<vmem>>) attributes {dimension_semantics = [#tpu.dimension_semantics<arbitrary>], iteration_bounds = array<i64: 4>, scalar_prefetch = 0 : i64, scratch_operands = 0 : i64, tpu.core_type = #tpu.core_type<tc>, window_params = [{transform_indices = @transform_0, window_bounds = array<i64: 4, 8>}, {pipeline_mode = #tpu.pipeline_mode<synchronous>, transform_indices = @transform_1, window_bounds = array<i64: 8, 128>}, {transform_indices = @transform_2, window_bounds = array<i64: 1, 8, 128>}, {transform_indices = @transform_3, window_bounds = array<i64: 1, 1, 128>}, {pipeline_mode = #tpu.pipeline_mode<synchronous>, transform_indices = @transform_4, window_bounds = array<i64: 128, 128>}, {pipeline_mode = #tpu.pipeline_mode<synchronous>, transform_indices = @transform_5, window_bounds = array<i64: 128, 128>}, {pipeline_mode = #tpu.pipeline_mode<synchronous>, transform_indices = @transform_6, window_bounds = array<i64: 1, 128>}, {pipeline_mode = #tpu.pipeline_mode<synchronous>, transform_indices = @transform_7, window_bounds = array<i64: 8, 128>}]} {
    %c0_i32 = arith.constant 0 : i32
    %0 = arith.cmpi eq, %arg0, %c0_i32 : i32
    %1 = arith.extui %0 : i1 to i32
    %c0_i32_0 = arith.constant 0 : i32
    %2 = arith.cmpi ne, %1, %c0_i32_0 : i32
    scf.if %2 {
      %c0_18 = arith.constant 0 : index
      %c0_19 = arith.constant 0 : index
      %33 = vector.load %arg2[%c0_18, %c0_19] : memref<8x128xf32, #tpu.memory_space<vmem>>, vector<8x128xf32>
      %c0_20 = arith.constant 0 : index
      %c0_21 = arith.constant 0 : index
      %34 = vector.load %arg8[%c0_20, %c0_21] : memref<8x128xf32, #tpu.memory_space<vmem>>, vector<8x128xf32>
      tpu.vector_store %arg8[%c0_20, %c0_21], %33 {strides = array<i32>} : memref<8x128xf32, #tpu.memory_space<vmem>>, vector<8x128xf32>,
    } else {
    }
    %c0 = arith.constant 0 : index
    %c0_1 = arith.constant 0 : index
    %3 = vector.load %arg8[%c0, %c0_1] : memref<8x128xf32, #tpu.memory_space<vmem>>, vector<8x128xf32>
    %c0_2 = arith.constant 0 : index
    %c0_3 = arith.constant 0 : index
    %4 = vector.load %arg5[%c0_2, %c0_3] : memref<128x128xf32, #tpu.memory_space<vmem>>, vector<128x128xf32>
    %cst = arith.constant dense<0.000000e+00> : vector<8x128xf32>
    %5 = tpu.matmul %3, %4, %cst {dimension_numbers = #tpu.dot_dimension_numbers<[1], [0], [0], [1], [0, 0, 1, 1], [], []>} : vector<8x128xf32>, vector<128x128xf32>, vector<8x128xf32> -> vector<8x128xf32>
    %c0_4 = arith.constant 0 : index
    %c0_5 = arith.constant 0 : index
    %c0_6 = arith.constant 0 : index
    %6 = vector.load %arg4[%c0_4, %c0_5, %c0_6] : memref<1x1x128xf32, #tpu.memory_space<vmem>>, vector<1x1x128xf32>
    %7 = vector.shape_cast %6 : vector<1x1x128xf32> to vector<1x128xf32>
    %8 = vector.broadcast %7 : vector<1x128xf32> to vector<8x128xf32>
    %9 = arith.addf %5, %8 : vector<8x128xf32>
    %10 = math.tanh %9 : vector<8x128xf32>
    %c0_7 = arith.constant 0 : index
    %c0_8 = arith.constant 0 : index
    %11 = vector.load %arg6[%c0_7, %c0_8] : memref<128x128xf32, #tpu.memory_space<vmem>>, vector<128x128xf32>
    %cst_9 = arith.constant dense<0.000000e+00> : vector<8x128xf32>
    %12 = tpu.matmul %10, %11, %cst_9 {dimension_numbers = #tpu.dot_dimension_numbers<[1], [0], [0], [1], [0, 0, 1, 1], [], []>} : vector<8x128xf32>, vector<128x128xf32>, vector<8x128xf32> -> vector<8x128xf32>
    %c0_10 = arith.constant 0 : index
    %c0_11 = arith.constant 0 : index
    %13 = vector.load %arg7[%c0_10, %c0_11] : memref<1x128xf32, #tpu.memory_space<vmem>>, vector<1x128xf32>
    %14 = vector.broadcast %13 : vector<1x128xf32> to vector<8x128xf32>
    %15 = arith.addf %12, %14 : vector<8x128xf32>
    %16 = arith.index_cast %arg0 : i32 to index
    %c0_12 = arith.constant 0 : index
    %17 = memref.load %arg1[%16, %c0_12] : memref<4x8xf32, #tpu.memory_space<smem>>
    %18 = arith.index_cast %arg0 : i32 to index
    %c1 = arith.constant 1 : index
    %19 = memref.load %arg1[%18, %c1] : memref<4x8xf32, #tpu.memory_space<smem>>
    %20 = arith.index_cast %arg0 : i32 to index
    %c2 = arith.constant 2 : index
    %21 = memref.load %arg1[%20, %c2] : memref<4x8xf32, #tpu.memory_space<smem>>
    %22 = vector.broadcast %17 : f32 to vector<8x128xf32>
    %23 = arith.mulf %22, %3 : vector<8x128xf32>
    %24 = vector.broadcast %19 : f32 to vector<8x128xf32>
    %25 = arith.mulf %24, %15 : vector<8x128xf32>
    %26 = arith.addf %23, %25 : vector<8x128xf32>
    %c0_13 = arith.constant 0 : index
    %c0_14 = arith.constant 0 : index
    %c0_15 = arith.constant 0 : index
    %27 = vector.load %arg3[%c0_13, %c0_14, %c0_15] : memref<1x8x128xf32, #tpu.memory_space<vmem>>, vector<1x8x128xf32>
    %28 = vector.shape_cast %27 : vector<1x8x128xf32> to vector<8x128xf32>
    %29 = vector.broadcast %21 : f32 to vector<8x128xf32>
    %30 = arith.mulf %29, %28 : vector<8x128xf32>
    %31 = arith.addf %26, %30 : vector<8x128xf32>
    %c0_16 = arith.constant 0 : index
    %c0_17 = arith.constant 0 : index
    %32 = vector.load %arg8[%c0_16, %c0_17] : memref<8x128xf32, #tpu.memory_space<vmem>>, vector<8x128xf32>
    tpu.vector_store %arg8[%c0_16, %c0_17], %31 {strides = array<i32>} : memref<8x128xf32, #tpu.memory_space<vmem>>, vector<8x128xf32>,
    return
  }
  func.func @transform_0(%arg0: i32) -> (i32, i32) {
    %c0_i32 = arith.constant 0 : i32
    %c0_i32_0 = arith.constant 0 : i32
    %c0_i32_1 = arith.constant 0 : i32
    return %c0_i32, %c0_i32_0 : i32, i32
  }
  func.func @transform_1(%arg0: i32) -> (i32, i32) {
    %c0_i32 = arith.constant 0 : i32
    %c0_i32_0 = arith.constant 0 : i32
    %c0_i32_1 = arith.constant 0 : i32
    return %c0_i32, %c0_i32_0 : i32, i32
  }
  func.func @transform_2(%arg0: i32) -> (i32, i32, i32) {
    %c0_i32 = arith.constant 0 : i32
    %c0_i32_0 = arith.constant 0 : i32
    %c0_i32_1 = arith.constant 0 : i32
    return %arg0, %c0_i32, %c0_i32_0 : i32, i32, i32
  }
  func.func @transform_3(%arg0: i32) -> (i32, i32, i32) {
    %c0_i32 = arith.constant 0 : i32
    %c0_i32_0 = arith.constant 0 : i32
    %c0_i32_1 = arith.constant 0 : i32
    return %arg0, %c0_i32, %c0_i32_0 : i32, i32, i32
  }
  func.func @transform_4(%arg0: i32) -> (i32, i32) {
    %c0_i32 = arith.constant 0 : i32
    %c0_i32_0 = arith.constant 0 : i32
    %c0_i32_1 = arith.constant 0 : i32
    return %c0_i32, %c0_i32_0 : i32, i32
  }
  func.func @transform_5(%arg0: i32) -> (i32, i32) {
    %c0_i32 = arith.constant 0 : i32
    %c0_i32_0 = arith.constant 0 : i32
    %c0_i32_1 = arith.constant 0 : i32
    return %c0_i32, %c0_i32_0 : i32, i32
  }
  func.func @transform_6(%arg0: i32) -> (i32, i32) {
    %c0_i32 = arith.constant 0 : i32
    %c0_i32_0 = arith.constant 0 : i32
    %c0_i32_1 = arith.constant 0 : i32
    return %c0_i32, %c0_i32_0 : i32, i32
  }
  func.func @transform_7(%arg0: i32) -> (i32, i32) {
    %c0_i32 = arith.constant 0 : i32
    %c0_i32_0 = arith.constant 0 : i32
    %c0_i32_1 = arith.constant 0 : i32
    return %c0_i32, %c0_i32_0 : i32, i32
  }
}

</mosaic_0001>

<llo_original>
// kernel: tpu_custom_call.1
$region0: #{tpu_custom_call.1}
  #allocation0 [shape = 'u32[]', space=smem, size = 0x4, offset = 0x4, fixed_abs, tag = 'smem constant byte address 0x4 - core index']
  #allocation1 [shape = 'u32[144,128]{1,0:T(1,128)}', space=vmem, size = 0x12000, scoped, tag = 'internal scratch']
  %s0 = inlined_call_operand.hbm [shape: f32[4,8], index: 0, kind: input, shape index: {}]
  %s1 = inlined_call_operand.hbm [shape: f32[8,128], index: 1, kind: input, shape index: {}]
  %s2 = inlined_call_operand.hbm [shape: f32[4,8,128], index: 2, kind: input, shape index: {}]
  %s3 = inlined_call_operand.vmem [shape: f32[4,1,128], index: 3, kind: input, shape index: {}]
  %s4 = inlined_call_operand.hbm [shape: f32[128,128], index: 4, kind: input, shape index: {}]
  %s5 = inlined_call_operand.hbm [shape: f32[128,128], index: 5, kind: input, shape index: {}]
  %s6 = inlined_call_operand.vmem [shape: f32[1,128], index: 6, kind: input, shape index: {}]
  %s7 = inlined_call_operand.hbm [shape: f32[8,128], index: 7, kind: output, shape index: {}]
  %s8 = sld [smem:[#allocation0]]
  $region85: #{tpu_custom_call.1} parent=0
    _
  %s10 = ssub.s32 1, %s8
  %s11 = scalar_select 0, %s10, %s8
  $region1: #{tpu_custom_call.1} parent=0
    #allocation2 [shape = 'u8[2048]{0}', space=smem, size = 0x800, scoped, tag = 'input window, operand 0, single buffered']
    #allocation3 [shape = 's32[2]{0}', space=sflag, size = 0x8, scoped, tag = 'scoped memory for tpu_custom_call.1']
    #allocation4 [shape = 's32[2]{0}', space=sflag, size = 0x8, scoped, tag = 'scoped memory for tpu_custom_call.1']
    #allocation5 [shape = 's32[2]{0}', space=sflag, size = 0x8, scoped, tag = 'scoped memory for tpu_custom_call.1']
    #allocation6 [shape = 'u8[4096]{0}', space=vmem, size = 0x1000, scoped, tag = 'input window, operand 1, single buffered']
    #allocation7 [shape = 'u8[8192]{0}', space=vmem, size = 0x2000, scoped, tag = 'input window, operand 2']
    #allocation8 [shape = 's32[2]{0}', space=sflag, size = 0x8, scoped, tag = 'scoped memory for tpu_custom_call.1']
    #allocation9 [shape = 'u8[65536]{0}', space=vmem, size = 0x10000, scoped, tag = 'input window, operand 4, single buffered']
    #allocation10 [shape = 'u8[65536]{0}', space=vmem, size = 0x10000, scoped, tag = 'input window, operand 5, single buffered']
    #allocation11 [shape = 's32[1]{0}', space=sflag, size = 0x4, scoped, tag = 'scoped memory for tpu_custom_call.1']
    #allocation12 [shape = 'u8[4096]{0}', space=vmem, size = 0x1000, scoped, tag = 'output window, operand 0, single buffered']
    %12 = vsyncpa [#allocation5], 0
    %13 = vsyncpa [#allocation3], 0
    %14 = vsyncpa [#allocation8], 0
    %s15 = scalar_lea.sflag [#allocation8], 1
    %16 = vsyncpa %s15, 0
    %17 = vsyncpa [#allocation11], 0
    %18 = vsyncpa [#allocation4], 0
    loop: start=0, step=1, limit=6
    $region2: #{tpu_custom_call.1} parent=1 // loop_pre_header
      _
    $region3: #{tpu_custom_call.1} parent=1 // loop_header
      %s20 = sphi 0, %s24
      %p21 = scmp.ge.s32.totalorder %s20, 6
      %s28 = sphi 0, %s28
      %s30 = sphi 0, %s28
      %s31 = sphi 0, %s30
      %s45 = sphi 0, %s31
      %s49 = sphi 0, %s49
      %s51 = sphi 0, %s49
      %s52 = sphi 0, %s51
      %s66 = sphi 0, %s52
      %s72 = sphi 0, %s74
      %s75 = sphi 0, %s72
      %s76 = sphi 0, %s75
      %s92 = sphi 0, %s76
      %s98 = sphi 0, %s100
      %s101 = sphi 0, %s98
      %s102 = sphi 0, %s101
      %s118 = sphi 0, %s102
      %s122 = sphi 0, %s122
      %s124 = sphi 0, %s122
      %s125 = sphi 0, %s124
      %s139 = sphi 0, %s125
      %s143 = sphi 0, %s143
      %s145 = sphi 0, %s143
      %s146 = sphi 0, %s145
      %s160 = sphi 0, %s146
      %s164 = sphi 0, %s164
      %s166 = sphi 0, %s164
      %s167 = sphi 0, %s166
      %s181 = sphi 0, %s167
      %s185 = sphi 0, %s185
      %s187 = sphi 0, %s185
      %s188 = sphi 0, %s187
      %s202 = sphi 0, %s188
    $region4: #{tpu_custom_call.1} parent=1 // loop_header_branch
      %23 = sbr.rel (%p21) target = $region8
    $region5: #{tpu_custom_call.1} parent=1 // loop_body
      %s25 = ssub.s32 %s20, 1
      %s26 = ssub.s32 %s20, 2
      %s27 = sadd.s32 %s20, 1
      %s29 = sadd.s32 %s28, 1
      %p32 = scmp.eq.s32.totalorder %s20, 3
      %p33 = scmp.ne.s32.totalorder %s28, %s30
      %p34 = scmp.eq.s32.totalorder %s20, 0
      %p35 = por %p33, %p34
      %p36 = scmp.ne.s32.totalorder %s28, %s30
      %p37 = scmp.eq.s32.totalorder %s25, 3
      %p38 = por %p36, %p37
      %p39 = scmp.ne.s32.totalorder %s30, %s31
      %p40 = scmp.eq.s32.totalorder %s25, 0
      %p41 = por %p39, %p40
      %p42 = scmp.ne.s32.totalorder %s30, %s31
      %p43 = scmp.eq.s32.totalorder %s26, 3
      %p44 = por %p42, %p43
      %p46 = scmp.ne.s32.totalorder %s31, %s45
      %p47 = scmp.eq.s32.totalorder %s26, 0
      %p48 = por %p46, %p47
      %s50 = sadd.s32 %s49, 1
      %p53 = scmp.eq.s32.totalorder %s20, 3
      %p54 = scmp.ne.s32.totalorder %s49, %s51
      %p55 = scmp.eq.s32.totalorder %s20, 0
      %p56 = por %p54, %p55
      %p57 = scmp.ne.s32.totalorder %s49, %s51
      %p58 = scmp.eq.s32.totalorder %s25, 3
      %p59 = por %p57, %p58
      %p60 = scmp.ne.s32.totalorder %s51, %s52
      %p61 = scmp.eq.s32.totalorder %s25, 0
      %p62 = por %p60, %p61
      %p63 = scmp.ne.s32.totalorder %s51, %s52
      %p64 = scmp.eq.s32.totalorder %s26, 3
      %p65 = por %p63, %p64
      %p67 = scmp.ne.s32.totalorder %s52, %s66
      %p68 = scmp.eq.s32.totalorder %s26, 0
      %p69 = por %p67, %p68
      %s70 = ssub.s32 %s20, %s27
      %p71 = scmp.eq.s32.totalorder %s70, 0
      %s73 = sadd.s32 %s72, 1
      %s74 = scalar_select %p71, %s72, %s73
      %p77 = pneg %p71
      %p78 = scmp.eq.s32.totalorder %s20, 3
      %p79 = por %p77, %p78
      %p80 = scmp.ne.s32.totalorder %s72, %s75
      %p81 = scmp.eq.s32.totalorder %s20, 0
      %p82 = por %p80, %p81
      %p83 = scmp.ne.s32.totalorder %s72, %s75
      %p84 = scmp.eq.s32.totalorder %s25, 3
      %p85 = por %p83, %p84
      %p86 = scmp.ne.s32.totalorder %s75, %s76
      %p87 = scmp.eq.s32.totalorder %s25, 0
      %p88 = por %p86, %p87
      %p89 = scmp.ne.s32.totalorder %s75, %s76
      %p90 = scmp.eq.s32.totalorder %s26, 3
      %p91 = por %p89, %p90
      %p93 = scmp.ne.s32.totalorder %s76, %s92
      %p94 = scmp.eq.s32.totalorder %s26, 0
      %p95 = por %p93, %p94
      %s96 = ssub.s32 %s20, %s27
      %p97 = scmp.eq.s32.totalorder %s96, 0
      %s99 = sadd.s32 %s98, 1
      %s100 = scalar_select %p97, %s98, %s99
      %p103 = pneg %p97
      %p104 = scmp.eq.s32.totalorder %s20, 3
      %p105 = por %p103, %p104
      %p106 = scmp.ne.s32.totalorder %s98, %s101
      %p107 = scmp.eq.s32.totalorder %s20, 0
      %p108 = por %p106, %p107
      %p109 = scmp.ne.s32.totalorder %s98, %s101
      %p110 = scmp.eq.s32.totalorder %s25, 3
      %p111 = por %p109, %p110
      %p112 = scmp.ne.s32.totalorder %s101, %s102
      %p113 = scmp.eq.s32.totalorder %s25, 0
      %p114 = por %p112, %p113
      %p115 = scmp.ne.s32.totalorder %s101, %s102
      %p116 = scmp.eq.s32.totalorder %s26, 3
      %p117 = por %p115, %p116
      %p119 = scmp.ne.s32.totalorder %s102, %s118
      %p120 = scmp.eq.s32.totalorder %s26, 0
      %p121 = por %p119, %p120
      %s123 = sadd.s32 %s122, 1
      %p126 = scmp.eq.s32.totalorder %s20, 3
      %p127 = scmp.ne.s32.totalorder %s122, %s124
      %p128 = scmp.eq.s32.totalorder %s20, 0
      %p129 = por %p127, %p128
      %p130 = scmp.ne.s32.totalorder %s122, %s124
      %p131 = scmp.eq.s32.totalorder %s25, 3
      %p132 = por %p130, %p131
      %p133 = scmp.ne.s32.totalorder %s124, %s125
      %p134 = scmp.eq.s32.totalorder %s25, 0
      %p135 = por %p133, %p134
      %p136 = scmp.ne.s32.totalorder %s124, %s125
      %p137 = scmp.eq.s32.totalorder %s26, 3
      %p138 = por %p136, %p137
      %p140 = scmp.ne.s32.totalorder %s125, %s139
      %p141 = scmp.eq.s32.totalorder %s26, 0
      %p142 = por %p140, %p141
      %s144 = sadd.s32 %s143, 1
      %p147 = scmp.eq.s32.totalorder %s20, 3
      %p148 = scmp.ne.s32.totalorder %s143, %s145
      %p149 = scmp.eq.s32.totalorder %s20, 0
      %p150 = por %p148, %p149
      %p151 = scmp.ne.s32.totalorder %s143, %s145
      %p152 = scmp.eq.s32.totalorder %s25, 3
      %p153 = por %p151, %p152
      %p154 = scmp.ne.s32.totalorder %s145, %s146
      %p155 = scmp.eq.s32.totalorder %s25, 0
      %p156 = por %p154, %p155
      %p157 = scmp.ne.s32.totalorder %s145, %s146
      %p158 = scmp.eq.s32.totalorder %s26, 3
      %p159 = por %p157, %p158
      %p161 = scmp.ne.s32.totalorder %s146, %s160
      %p162 = scmp.eq.s32.totalorder %s26, 0
      %p163 = por %p161, %p162
      %s165 = sadd.s32 %s164, 1
      %p168 = scmp.eq.s32.totalorder %s20, 3
      %p169 = scmp.ne.s32.totalorder %s164, %s166
      %p170 = scmp.eq.s32.totalorder %s20, 0
      %p171 = por %p169, %p170
      %p172 = scmp.ne.s32.totalorder %s164, %s166
      %p173 = scmp.eq.s32.totalorder %s25, 3
      %p174 = por %p172, %p173
      %p175 = scmp.ne.s32.totalorder %s166, %s167
      %p176 = scmp.eq.s32.totalorder %s25, 0
      %p177 = por %p175, %p176
      %p178 = scmp.ne.s32.totalorder %s166, %s167
      %p179 = scmp.eq.s32.totalorder %s26, 3
      %p180 = por %p178, %p179
      %p182 = scmp.ne.s32.totalorder %s167, %s181
      %p183 = scmp.eq.s32.totalorder %s26, 0
      %p184 = por %p182, %p183
      %s186 = sadd.s32 %s185, 1
      %p189 = scmp.eq.s32.totalorder %s20, 3
      %p190 = scmp.ne.s32.totalorder %s185, %s187
      %p191 = scmp.eq.s32.totalorder %s20, 0
      %p192 = por %p190, %p191
      %p193 = scmp.ne.s32.totalorder %s185, %s187
      %p194 = scmp.eq.s32.totalorder %s25, 3
      %p195 = por %p193, %p194
      %p196 = scmp.ne.s32.totalorder %s187, %s188
      %p197 = scmp.eq.s32.totalorder %s25, 0
      %p198 = por %p196, %p197
      %p199 = scmp.ne.s32.totalorder %s187, %s188
      %p200 = scmp.eq.s32.totalorder %s26, 3
      %p201 = por %p199, %p200
      %p203 = scmp.ne.s32.totalorder %s188, %s202
      %p204 = scmp.eq.s32.totalorder %s26, 0
      %p205 = por %p203, %p204
      %p206 = scmp.le.s32.totalorder 1, %s20
      %p207 = scmp.lt.s32.totalorder %s20, 5
      %p208 = pnand %p206, %p207
      %p209 = pneg %p208
      // Predicated region
      $region9: #{tpu_custom_call.1} parent=5 // pred_check
        _
      $region10: #{tpu_custom_call.1} parent=5 // pred_check_branch
        %211 = sbr.rel (%p208) target = $region12
      $region11: #{tpu_custom_call.1} parent=5 // pred_region
        %s212 = ssub.s32 %s20, 1
        // Predicated region
        $region13: #{tpu_custom_call.1} parent=11 // pred_check
          %p213 = pneg %p41
        $region14: #{tpu_custom_call.1} parent=11 // pred_check_branch
          %215 = sbr.rel (%p213) target = $region16
        $region15: #{tpu_custom_call.1} parent=11 // pred_region
          %s217 = ssub.s32 64, 64
          %218 = vsyncadd [#allocation5], %s217
          %221 = dma.hbm_to_smem %s0, 64, [#allocation2], [#allocation5]
        $region16: #{tpu_custom_call.1} parent=11 // pred_fallthru
          _
        // Predicated region
        $region17: #{tpu_custom_call.1} parent=11 // pred_check
          %p222 = pneg %p62
        $region18: #{tpu_custom_call.1} parent=11 // pred_check_branch
          %224 = sbr.rel (%p222) target = $region20
        $region19: #{tpu_custom_call.1} parent=11 // pred_region
          %s226 = ssub.s32 128, 128
          %227 = vsyncadd [#allocation3], %s226
          %s229 = sshll.u32 [#allocation6], 4
          %s230 = int_to_ptr.vmem [resolvable:$true] %s229
          %232 = dma.hbm_to_vmem [thread:$0]  %s1, 128, %s230, [#allocation3]
        $region20: #{tpu_custom_call.1} parent=11 // pred_fallthru
          _
        // Predicated region
        $region21: #{tpu_custom_call.1} parent=11 // pred_check
          %p233 = pneg %p135
        $region22: #{tpu_custom_call.1} parent=11 // pred_check_branch
          %235 = sbr.rel (%p233) target = $region24
        $region23: #{tpu_custom_call.1} parent=11 // pred_region
          %s237 = ssub.s32 2048, 2048
          %238 = vsyncadd [#allocation8], %s237
          %s239 = sshll.u32 [#allocation9], 4
          %s240 = int_to_ptr.vmem [resolvable:$true] %s239
          %245 = dma.hbm_to_vmem [thread:$0]  %s4, 2048, %s240, [#allocation8], 128, 128, 8
        $region24: #{tpu_custom_call.1} parent=11 // pred_fallthru
          _
        // Predicated region
        $region25: #{tpu_custom_call.1} parent=11 // pred_check
          %p246 = pneg %p156
        $region26: #{tpu_custom_call.1} parent=11 // pred_check_branch
          %248 = sbr.rel (%p246) target = $region28
        $region27: #{tpu_custom_call.1} parent=11 // pred_region
          %s250 = ssub.s32 2048, 2048
          %251 = vsyncadd [#allocation11], %s250
          %s252 = sshll.u32 [#allocation10], 4
          %s253 = int_to_ptr.vmem [resolvable:$true] %s252
          %258 = dma.hbm_to_vmem [thread:$0]  %s5, 2048, %s253, [#allocation11], 128, 128, 8
        $region28: #{tpu_custom_call.1} parent=11 // pred_fallthru
          _
        // Predicated region
        $region29: #{tpu_custom_call.1} parent=11 // pred_check
          %p259 = pneg %p177
        $region30: #{tpu_custom_call.1} parent=11 // pred_check_branch
          %261 = sbr.rel (%p259) target = $region32
        $region31: #{tpu_custom_call.1} parent=11 // pred_region
          _
        $region32: #{tpu_custom_call.1} parent=11 // pred_fallthru
          _
      $region12: #{tpu_custom_call.1} parent=5 // pred_fallthru
        _
      %p262 = scmp.lt.s32.totalorder %s20, 4
      // Predicated region
      $region33: #{tpu_custom_call.1} parent=5 // pred_check
        %p263 = pneg %p262
      $region34: #{tpu_custom_call.1} parent=5 // pred_check_branch
        %265 = sbr.rel (%p263) target = $region36
      $region35: #{tpu_custom_call.1} parent=5 // pred_region
        // Predicated region
        $region37: #{tpu_custom_call.1} parent=35 // pred_check
          %p266 = pneg %p82
        $region38: #{tpu_custom_call.1} parent=35 // pred_check_branch
          %268 = sbr.rel (%p266) target = $region40
        $region39: #{tpu_custom_call.1} parent=35 // pred_region
          %s269 = sand.u32 %s20, 1
          %s270 = scalar_lea.sflag [#allocation8], %s269
          %s271 = sand.u32 %s72, 1
          %s272 = smul.addr %s271, 8
          %s273 = scalar_lea.vmem [#allocation7], %s272
          %s275 = ssub.s32 128, 128
          %276 = vsyncadd %s270, %s275
          %s277 = smul.addr %s20, 128
          %s278 = scalar_lea.hbm %s2, %s277
          %s280 = sshll.u32 %s273, 4
          %s281 = int_to_ptr.vmem [resolvable:$true] %s280
          %283 = dma.hbm_to_vmem [thread:$0]  %s278, 128, %s281, %s270
        $region40: #{tpu_custom_call.1} parent=35 // pred_fallthru
          _
        // Predicated region
        $region41: #{tpu_custom_call.1} parent=35 // pred_check
          %p284 = pneg %p108
        $region42: #{tpu_custom_call.1} parent=35 // pred_check_branch
          %286 = sbr.rel (%p284) target = $region44
        $region43: #{tpu_custom_call.1} parent=35 // pred_region
          %p287 = scmp.lt.s32.totalorder %s20, 3
          %s288 = scalar_select %p287, %s20, 3
          %s289 = scalar_lea.vmem %s3, %s288
        $region44: #{tpu_custom_call.1} parent=35 // pred_fallthru
          _
      $region36: #{tpu_custom_call.1} parent=5 // pred_fallthru
        _
      %p290 = scmp.le.s32.totalorder 1, %s20
      %p291 = scmp.lt.s32.totalorder %s20, 5
      %p292 = pnand %p290, %p291
      %p293 = pneg %p292
      // Predicated region
      $region45: #{tpu_custom_call.1} parent=5 // pred_check
        _
      $region46: #{tpu_custom_call.1} parent=5 // pred_check_branch
        %295 = sbr.rel (%p292) target = $region48
      $region47: #{tpu_custom_call.1} parent=5 // pred_region
        %s296 = ssub.s32 %s20, 1
        // Predicated region
        $region49: #{tpu_custom_call.1} parent=47 // pred_check
          %p297 = pneg %p41
        $region50: #{tpu_custom_call.1} parent=47 // pred_check_branch
          %299 = sbr.rel (%p297) target = $region52
        $region51: #{tpu_custom_call.1} parent=47 // pred_region
          %300 = dma.done [#allocation5], 64
        $region52: #{tpu_custom_call.1} parent=47 // pred_fallthru
          _
        // Predicated region
        $region53: #{tpu_custom_call.1} parent=47 // pred_check
          %p301 = pneg %p62
        $region54: #{tpu_custom_call.1} parent=47 // pred_check_branch
          %303 = sbr.rel (%p301) target = $region56
        $region55: #{tpu_custom_call.1} parent=47 // pred_region
          %304 = dma.done [#allocation3], 128
        $region56: #{tpu_custom_call.1} parent=47 // pred_fallthru
          _
        %s305 = sand.u32 %s25, 1
        %s306 = scalar_lea.sflag [#allocation8], %s305
        %s307 = sand.u32 %s75, 1
        %s308 = smul.addr %s307, 8
        %s309 = scalar_lea.vmem [#allocation7], %s308
        // Predicated region
        $region57: #{tpu_custom_call.1} parent=47 // pred_check
          %p310 = pneg %p88
        $region58: #{tpu_custom_call.1} parent=47 // pred_check_branch
          %312 = sbr.rel (%p310) target = $region60
        $region59: #{tpu_custom_call.1} parent=47 // pred_region
          %313 = dma.done %s306, 128
        $region60: #{tpu_custom_call.1} parent=47 // pred_fallthru
          _
        // Predicated region
        $region61: #{tpu_custom_call.1} parent=47 // pred_check
          %p314 = pneg %p135
        $region62: #{tpu_custom_call.1} parent=47 // pred_check_branch
          %316 = sbr.rel (%p314) target = $region64
        $region63: #{tpu_custom_call.1} parent=47 // pred_region
          %317 = dma.done [#allocation8], 2048
        $region64: #{tpu_custom_call.1} parent=47 // pred_fallthru
          _
        // Predicated region
        $region65: #{tpu_custom_call.1} parent=47 // pred_check
          %p318 = pneg %p156
        $region66: #{tpu_custom_call.1} parent=47 // pred_check_branch
          %320 = sbr.rel (%p318) target = $region68
        $region67: #{tpu_custom_call.1} parent=47 // pred_region
          %321 = dma.done [#allocation11], 2048
        $region68: #{tpu_custom_call.1} parent=47 // pred_fallthru
          _
        %322 = sfence
        %p323 = pneg %p41
        %p324 = pneg %p38
        %p325 = pneg %p62
        %p326 = pneg %p59
        %s327 = sand.u32 %s25, 1
        %s328 = scalar_lea.sflag [#allocation8], %s327
        %s329 = sand.u32 %s75, 1
        %s330 = smul.addr %s329, 8
        %s331 = scalar_lea.vmem [#allocation7], %s330
        %p332 = pneg %p88
        %p333 = pneg %p85
        %p334 = scmp.lt.s32.totalorder %s25, 3
        %s335 = scalar_select %p334, %s25, 3
        %s336 = scalar_lea.vmem %s3, %s335
        %p337 = pneg %p114
        %p338 = pneg %p111
        %p339 = pneg %p135
        %p340 = pneg %p132
        %p341 = pneg %p156
        %p342 = pneg %p153
        %p343 = pneg %p177
        %p344 = pneg %p174
        %p345 = pneg %p198
        %p346 = pneg %p195
        %p347 = scmp.lt.s32.totalorder %s25, 3
        %s348 = scalar_select %p347, %s25, 3
        %s349 = scalar_lea.vmem %s3, %s348
        %p350 = scmp.eq.s32.totalorder %s25, 0
        // Predicated region
        $region69: #{tpu_custom_call.1} parent=47 // pred_check
          %p351 = pneg %p350
        $region70: #{tpu_custom_call.1} parent=47 // pred_check_branch
          %353 = sbr.rel (%p351) target = $region72
        $region71: #{tpu_custom_call.1} parent=47 // pred_region
          %v354 = vld [vmem:[#allocation6] sm:$0xff]
          %355 = vst [vmem:[#allocation12] sm:$0xff] %v354
        $region72: #{tpu_custom_call.1} parent=47 // pred_fallthru
          _
        %v356 = vld [vmem:[#allocation12] sm:$0xff]
        %v357 = vld [vmem:[#allocation9] sm:$0xff]
        %v358 = vld [vmem:[#allocation9 + $0x8] sm:$0xff]
        %v359 = vld [vmem:[#allocation9 + $0x10] sm:$0xff]
        %v360 = vld [vmem:[#allocation9 + $0x18] sm:$0xff]
        %v361 = vld [vmem:[#allocation9 + $0x20] sm:$0xff]
        %v362 = vld [vmem:[#allocation9 + $0x28] sm:$0xff]
        %v363 = vld [vmem:[#allocation9 + $0x30] sm:$0xff]
        %v364 = vld [vmem:[#allocation9 + $0x38] sm:$0xff]
        %v365 = vld [vmem:[#allocation9 + $0x40] sm:$0xff]
        %v366 = vld [vmem:[#allocation9 + $0x48] sm:$0xff]
        %v367 = vld [vmem:[#allocation9 + $0x50] sm:$0xff]
        %v368 = vld [vmem:[#allocation9 + $0x58] sm:$0xff]
        %v369 = vld [vmem:[#allocation9 + $0x60] sm:$0xff]
        %v370 = vld [vmem:[#allocation9 + $0x68] sm:$0xff]
        %v371 = vld [vmem:[#allocation9 + $0x70] sm:$0xff]
        %v372 = vld [vmem:[#allocation9 + $0x78] sm:$0xff]
        %v373 = vld [vmem:[%s349] sm:$0x1]
        %v375 = vlaneseq
        %v376 = vshrl.u32 %v375, 7
        %v377 = vsub.s32 0, %v376
        %v378 = vrot.slane %v373, %v377
        %380 = vmatprep.subr.mxu0 0.0
        %381 = vmatpush1.msra.mxu0 %v357
        %382 = vmatprep.subr.mxu0 0.0
        %383 = vmatpush1.msra.mxu0 %v358
        %384 = vmatprep.subr.mxu0 0.0
        %385 = vmatpush1.msra.mxu0 %v359
        %386 = vmatprep.subr.mxu0 0.0
        %387 = vmatpush1.msra.mxu0 %v360
        %388 = vmatprep.subr.mxu0 0.0
        %389 = vmatpush1.msra.mxu0 %v361
        %390 = vmatprep.subr.mxu0 0.0
        %391 = vmatpush1.msra.mxu0 %v362
        %392 = vmatprep.subr.mxu0 0.0
        %393 = vmatpush1.msra.mxu0 %v363
        %394 = vmatprep.subr.mxu0 0.0
        %395 = vmatpush1.msra.mxu0 %v364
        %396 = vmatprep.subr.mxu0 0.0
        %397 = vmatpush1.msra.mxu0 %v365
        %398 = vmatprep.subr.mxu0 0.0
        %399 = vmatpush1.msra.mxu0 %v366
        %400 = vmatprep.subr.mxu0 0.0
        %401 = vmatpush1.msra.mxu0 %v367
        %402 = vmatprep.subr.mxu0 0.0
        %403 = vmatpush1.msra.mxu0 %v368
        %404 = vmatprep.subr.mxu0 0.0
        %405 = vmatpush1.msra.mxu0 %v369
        %406 = vmatprep.subr.mxu0 0.0
        %407 = vmatpush1.msra.mxu0 %v370
        %408 = vmatprep.subr.mxu0 0.0
        %409 = vmatpush1.msra.mxu0 %v371
        %410 = vmatprep.subr.mxu0 0.0
        %411 = vmatpush1.msra.mxu0 %v372
        %412 = vmatprep.subr.mxu0 0.0
        %413 = vmatpush1.msra.mxu0 0.0
        %414 = vmatprep.subr.mxu0 0.0
        %415 = vmatpush1.msra.mxu0 0.0
        %416 = vmatprep.subr.mxu0 0.0
        %417 = vmatpush1.msra.mxu0 0.0
        %418 = vmatprep.subr.mxu0 0.0
        %419 = vmatpush1.msra.mxu0 0.0
        %420 = vmatprep.subr.mxu0 0.0
        %421 = vmatpush1.msra.mxu0 0.0
        %422 = vmatprep.subr.mxu0 0.0
        %423 = vmatpush1.msra.mxu0 0.0
        %424 = vmatprep.subr.mxu0 0.0
        %425 = vmatpush1.msra.mxu0 0.0
        %426 = vmatprep.subr.mxu0 0.0
        %427 = vmatpush1.msra.mxu0 0.0
        %428 = vmatprep.subr.mxu0 0.0
        %429 = vmatpush1.msra.mxu0 0.0
        %430 = vmatprep.subr.mxu0 0.0
        %431 = vmatpush1.msra.mxu0 0.0
        %432 = vmatprep.subr.mxu0 0.0
        %433 = vmatpush1.msra.mxu0 0.0
        %434 = vmatprep.subr.mxu0 0.0
        %435 = vmatpush1.msra.mxu0 0.0
        %436 = vmatprep.subr.mxu0 0.0
        %437 = vmatpush1.msra.mxu0 0.0
        %438 = vmatprep.subr.mxu0 0.0
        %439 = vmatpush1.msra.mxu0 0.0
        %440 = vmatprep.subr.mxu0 0.0
        %441 = vmatpush1.msra.mxu0 0.0
        %442 = vmatprep.subr.mxu0 0.0
        %443 = vmatpush1.msra.mxu0 0.0
        %444 = vmatprep.mubr.f32.mxu0 0.0
        %445 = vmatmul.mubr.f32.gmra.mrb[0].mxu0 %v356
        %v446 = vpop.f32.mrb[0].mxu0
        %v447 = vadd.f32 %v378, %v446
        %v448 = vpop.f32.mrb[0].mxu0
        %449 = vdwg.mxu0
        %v450 = vtanh.pop %v447
        %v451 = vld [vmem:[#allocation10] sm:$0xff]
        %v452 = vld [vmem:[#allocation10 + $0x8] sm:$0xff]
        %v453 = vld [vmem:[#allocation10 + $0x10] sm:$0xff]
        %v454 = vld [vmem:[#allocation10 + $0x18] sm:$0xff]
        %v455 = vld [vmem:[#allocation10 + $0x20] sm:$0xff]
        %v456 = vld [vmem:[#allocation10 + $0x28] sm:$0xff]
        %v457 = vld [vmem:[#allocation10 + $0x30] sm:$0xff]
        %v458 = vld [vmem:[#allocation10 + $0x38] sm:$0xff]
        %v459 = vld [vmem:[#allocation10 + $0x40] sm:$0xff]
        %v460 = vld [vmem:[#allocation10 + $0x48] sm:$0xff]
        %v461 = vld [vmem:[#allocation10 + $0x50] sm:$0xff]
        %v462 = vld [vmem:[#allocation10 + $0x58] sm:$0xff]
        %v463 = vld [vmem:[#allocation10 + $0x60] sm:$0xff]
        %v464 = vld [vmem:[#allocation10 + $0x68] sm:$0xff]
        %v465 = vld [vmem:[#allocation10 + $0x70] sm:$0xff]
        %v466 = vld [vmem:[#allocation10 + $0x78] sm:$0xff]
        %v467 = vld [vmem:[%s6] sm:$0x1]
        %v469 = vlaneseq
        %v470 = vshrl.u32 %v469, 7
        %v471 = vsub.s32 0, %v470
        %v472 = vrot.slane %v467, %v471
        %474 = vmatprep.subr.mxu0 0.0
        %475 = vmatpush1.msra.mxu0 %v451
        %476 = vmatprep.subr.mxu0 0.0
        %477 = vmatpush1.msra.mxu0 %v452
        %478 = vmatprep.subr.mxu0 0.0
        %479 = vmatpush1.msra.mxu0 %v453
        %480 = vmatprep.subr.mxu0 0.0
        %481 = vmatpush1.msra.mxu0 %v454
        %482 = vmatprep.subr.mxu0 0.0
        %483 = vmatpush1.msra.mxu0 %v455
        %484 = vmatprep.subr.mxu0 0.0
        %485 = vmatpush1.msra.mxu0 %v456
        %486 = vmatprep.subr.mxu0 0.0
        %487 = vmatpush1.msra.mxu0 %v457
        %488 = vmatprep.subr.mxu0 0.0
        %489 = vmatpush1.msra.mxu0 %v458
        %490 = vmatprep.subr.mxu0 0.0
        %491 = vmatpush1.msra.mxu0 %v459
        %492 = vmatprep.subr.mxu0 0.0
        %493 = vmatpush1.msra.mxu0 %v460
        %494 = vmatprep.subr.mxu0 0.0
        %495 = vmatpush1.msra.mxu0 %v461
        %496 = vmatprep.subr.mxu0 0.0
        %497 = vmatpush1.msra.mxu0 %v462
        %498 = vmatprep.subr.mxu0 0.0
        %499 = vmatpush1.msra.mxu0 %v463
        %500 = vmatprep.subr.mxu0 0.0
        %501 = vmatpush1.msra.mxu0 %v464
        %502 = vmatprep.subr.mxu0 0.0
        %503 = vmatpush1.msra.mxu0 %v465
        %504 = vmatprep.subr.mxu0 0.0
        %505 = vmatpush1.msra.mxu0 %v466
        %506 = vmatprep.subr.mxu0 0.0
        %507 = vmatpush1.msra.mxu0 0.0
        %508 = vmatprep.subr.mxu0 0.0
        %509 = vmatpush1.msra.mxu0 0.0
        %510 = vmatprep.subr.mxu0 0.0
        %511 = vmatpush1.msra.mxu0 0.0
        %512 = vmatprep.subr.mxu0 0.0
        %513 = vmatpush1.msra.mxu0 0.0
        %514 = vmatprep.subr.mxu0 0.0
        %515 = vmatpush1.msra.mxu0 0.0
        %516 = vmatprep.subr.mxu0 0.0
        %517 = vmatpush1.msra.mxu0 0.0
        %518 = vmatprep.subr.mxu0 0.0
        %519 = vmatpush1.msra.mxu0 0.0
        %520 = vmatprep.subr.mxu0 0.0
        %521 = vmatpush1.msra.mxu0 0.0
        %522 = vmatprep.subr.mxu0 0.0
        %523 = vmatpush1.msra.mxu0 0.0
        %524 = vmatprep.subr.mxu0 0.0
        %525 = vmatpush1.msra.mxu0 0.0
        %526 = vmatprep.subr.mxu0 0.0
        %527 = vmatpush1.msra.mxu0 0.0
        %528 = vmatprep.subr.mxu0 0.0
        %529 = vmatpush1.msra.mxu0 0.0
        %530 = vmatprep.subr.mxu0 0.0
        %531 = vmatpush1.msra.mxu0 0.0
        %532 = vmatprep.subr.mxu0 0.0
        %533 = vmatpush1.msra.mxu0 0.0
        %534 = vmatprep.subr.mxu0 0.0
        %535 = vmatpush1.msra.mxu0 0.0
        %536 = vmatprep.subr.mxu0 0.0
        %537 = vmatpush1.msra.mxu0 0.0
        %538 = vmatprep.mubr.f32.mxu0 0.0
        %539 = vmatmul.mubr.f32.gmra.mrb[0].mxu0 %v450
        %v540 = vpop.f32.mrb[0].mxu0
        %v541 = vadd.f32 %v472, %v540
        %v542 = vpop.f32.mrb[0].mxu0
        %543 = vdwg.mxu0
        %s544 = smul.u32 %s25, 128
        %s545 = sld [smem:[#allocation2 + %s544]]
        %s546 = sadd.s32 %s544, 1
        %s547 = sld [smem:[#allocation2 + %s546]]
        %s548 = sadd.s32 %s544, 2
        %s549 = sld [smem:[#allocation2 + %s548]]
        %v550 = vstv %s545
        %v551 = vmul.f32 %v550, %v356
        %v552 = vstv %s547
        %v553 = vmul.f32 %v552, %v541
        %v554 = vadd.f32 %v551, %v553
        %v555 = vld [vmem:[%s309] sm:$0xff]
        %v556 = vstv %s549
        %v557 = vmul.f32 %v556, %v555
        %v558 = vadd.f32 %v554, %v557
        %559 = vst [vmem:[#allocation12] sm:$0xff] %v558
        // Predicated region
        $region73: #{tpu_custom_call.1} parent=47 // pred_check
          %p560 = pneg %p195
        $region74: #{tpu_custom_call.1} parent=47 // pred_check_branch
          %562 = sbr.rel (%p560) target = $region76
        $region75: #{tpu_custom_call.1} parent=47 // pred_region
          %s564 = ssub.s32 128, 128
          %565 = vsyncadd [#allocation4], %s564
          %s567 = sshll.u32 [#allocation12], 4
          %s568 = int_to_ptr.vmem [resolvable:$true] %s567
          %570 = dma.vmem_to_hbm [thread:$0]  %s568, 128, %s7, [#allocation4]
        $region76: #{tpu_custom_call.1} parent=47 // pred_fallthru
          _
        // Predicated region
        $region77: #{tpu_custom_call.1} parent=47 // pred_check
          %p571 = pneg %p195
        $region78: #{tpu_custom_call.1} parent=47 // pred_check_branch
          %573 = sbr.rel (%p571) target = $region80
        $region79: #{tpu_custom_call.1} parent=47 // pred_region
          %574 = dma.done [#allocation4], 128
        $region80: #{tpu_custom_call.1} parent=47 // pred_fallthru
          _
      $region48: #{tpu_custom_call.1} parent=5 // pred_fallthru
        _
      %p575 = scmp.le.s32.totalorder 2, %s20
      // Predicated region
      $region81: #{tpu_custom_call.1} parent=5 // pred_check
        %p576 = pneg %p575
      $region82: #{tpu_custom_call.1} parent=5 // pred_check_branch
        %578 = sbr.rel (%p576) target = $region84
      $region83: #{tpu_custom_call.1} parent=5 // pred_region
        %s579 = ssub.s32 %s20, 2
      $region84: #{tpu_custom_call.1} parent=5 // pred_fallthru
        _
    $region6: #{tpu_custom_call.1} parent=1 // loop_footer
      %s24 = sadd.s32 1, %s20
    $region7: #{tpu_custom_call.1} parent=1 // loop_footer_branch
      %19 = sbr.rel target = $region3
    $region8: #{tpu_custom_call.1} parent=1 // loop_exit
      _
    %580 = vsyncpa [#allocation3], 1
    %s581 = scalar_lea.sflag [#allocation3], 1
    %582 = vsyncpa %s581, 1
    %583 = vsyncpa [#allocation8], 1
    %s584 = scalar_lea.sflag [#allocation8], 1
    %585 = vsyncpa %s584, 1
    %586 = vsyncpa [#allocation11], 1
    %587 = vsyncpa [#allocation4], 1
    %s588 = scalar_lea.sflag [#allocation4], 1
    %589 = vsyncpa %s588, 1
    %590 = vsyncpa [#allocation5], 1
    %s591 = scalar_lea.sflag [#allocation5], 1
    %592 = vsyncpa %s591, 1

</llo_original>
